<compile_context>
chip_gen: v5e
topology: v5e:2x2
jax: 0.10.0
libtpu: 0.0.40
codegen_flags: <defaults>
</compile_context>

<pallas_src>
import jax
import jax.numpy as jnp
from jax.experimental import pallas as pl
from jax.experimental.pallas import tpu as pltpu


def _round_up(x, m):
    return ((x + m - 1) // m) * m


def _adversary_kernel(xb_ref, wt_ref, res_ref, o_ref, acc_ref):
    """One (tm, tn) output tile of  o = x @ W.T + x, reduced over K tiles.

    xb_ref : (tm, tk)  matmul x block (pre-cast to bf16 in the wrapper).
    wt_ref : (tk, tn)  W.T block (pre-transposed/cast/padded in the wrapper).
    res_ref: (tm, tn)  residual x block, original dtype (exact residual add).
    o_ref  : (tm, tn)  output tile (written on the last K step only).
    acc_ref: (tm, tn)  f32 accumulator scratch, resident across the K axis.
    """
    k = pl.program_id(2)

    @pl.when(k == 0)
    def _():
        acc_ref[...] = jnp.zeros_like(acc_ref)

    acc_ref[...] += jnp.dot(
        xb_ref[...], wt_ref[...], preferred_element_type=jnp.float32
    )

    @pl.when(k == pl.num_programs(2) - 1)
    def _():
        o_ref[...] = (acc_ref[...] + res_ref[...].astype(jnp.float32)).astype(
            o_ref.dtype
        )


def prepare_adversary_weight(weight, operand_dtype=jnp.bfloat16):
    """One-time prep of the (static) adversary weight: W.T, cast, pad to 256.

    Hoist this out of the per-forward path. Pass operand_dtype=jnp.float32 for
    an exact-operand fallback (trained / large-magnitude weights).
    """
    dim = weight.shape[0]
    assert weight.shape == (dim, dim)
    dim_pad = _round_up(dim, 256)  # MXU-friendly (2x256^2), lane-dense output.
    wt = jnp.transpose(weight).astype(operand_dtype)  # (dim, dim) == W.T
    if dim_pad != dim:
        wt = jnp.pad(wt, ((0, dim_pad - dim), (0, dim_pad - dim)))
    return wt


def _pick_tm(m):
    """Row tile: big enough for MXU reuse, minimal row padding for odd m."""
    m8 = _round_up(m, 8)
    if m8 <= 512:
        return m8
    best_tm, best_key = None, None
    for cand in (1024, 512, 256):
        waste = _round_up(m8, cand) - m8
        key = (waste, -cand)
        if best_key is None or key < best_key:
            best_tm, best_key = cand, key
    return best_tm


def full_rank_adversary_apply(x, wt_padded):
    """y = x @ W.T + x, given the prepared W.T from prepare_adversary_weight."""
    dim = x.shape[-1]
    dim_pad = wt_padded.shape[0]
    assert wt_padded.shape == (dim_pad, dim_pad) and dim_pad >= dim

    orig_shape = x.shape
    x2 = x.reshape(-1, dim)
    m = x2.shape[0]

    tm = _pick_tm(m)
    m_pad = _round_up(m, tm)
    tn = 512 if dim_pad % 512 == 0 else 256
    tk = next(c for c in (1024, 512, 256) if dim_pad % c == 0)

    # Residual copy stays in the original dtype (exact add); matmul operand is
    # cast to the weight's operand dtype ONCE here (not per column tile).
    x_res = x2
    if (m_pad, dim_pad) != (m, dim):
        x_res = jnp.pad(x2, ((0, m_pad - m), (0, dim_pad - dim)))
    x_mm = x_res.astype(wt_padded.dtype)

    gm, gn, gk = m_pad // tm, dim_pad // tn, dim_pad // tk
    itemsize = jnp.dtype(x.dtype).itemsize
    w_itemsize = jnp.dtype(wt_padded.dtype).itemsize

    cost = pl.CostEstimate(
        flops=2 * m_pad * dim_pad * dim_pad,
        transcendentals=0,
        bytes_accessed=(
            gn * m_pad * dim_pad * w_itemsize       # x re-streamed per column tile
            + gm * dim_pad * dim_pad * w_itemsize   # W re-streamed per row band
            + 2 * m_pad * dim_pad * itemsize        # residual read + output write
        ),
    )

    out = pl.pallas_call(
        _adversary_kernel,
        out_shape=jax.ShapeDtypeStruct((m_pad, dim_pad), x.dtype),
        grid_spec=pltpu.PrefetchScalarGridSpec(
            num_scalar_prefetch=0,
            grid=(gm, gn, gk),
            in_specs=[
                pl.BlockSpec((tm, tk), lambda i, j, k: (i, k)),  # x (matmul op)
                pl.BlockSpec((tk, tn), lambda i, j, k: (k, j)),  # W.T
                pl.BlockSpec((tm, tn), lambda i, j, k: (i, j)),  # residual x
            ],
            out_specs=pl.BlockSpec((tm, tn), lambda i, j, k: (i, j)),
            scratch_shapes=[pltpu.VMEM((tm, tn), jnp.float32)],
        ),
        compiler_params=pltpu.CompilerParams(
            # Leading row axis parallel -> megacore/2-TC splits rows (no
            # duplicated x fetch); K reduction axis is last and "arbitrary".
            dimension_semantics=("parallel", "parallel", "arbitrary"),
            vmem_limit_bytes=48 * 1024 * 1024,
        ),
        cost_estimate=cost,
    )(x_mm, wt_padded, x_res)

    return out[:m, :dim].reshape(orig_shape)


def full_rank_adversary(x, weight, operand_dtype=jnp.bfloat16):
    """Convenience one-shot path: y = x @ weight.T + x (bias=False).

    For repeated forwards with a static weight, call prepare_adversary_weight
    once and reuse full_rank_adversary_apply.
    """
    return full_rank_adversary_apply(
        x, prepare_adversary_weight(weight, operand_dtype)
    )


if __name__ == "__main__":
    key = jax.random.PRNGKey(0)

    # Module-consistent small shapes: batch=2, seq=8, dim=32.
    batch, seq, dim = 2, 8, 32
    x = jax.random.normal(key, (batch, seq, dim), dtype=jnp.float32)

    # Parameter init exactly as the module's __init__: weight zeroed.
    weight = jnp.zeros((dim, dim), dtype=jnp.float32)
    wt_prepped = prepare_adversary_weight(weight)

    y = jax.block_until_ready(full_rank_adversary_apply(x, wt_prepped))
    y_ref = x @ weight.T + x  # == x for the zero-initialized adversary
    assert y.shape == x.shape
    assert jnp.allclose(y, y_ref, atol=1e-5), "mismatch vs reference (zero W)"

    # Structural check of the matmul / padding / residual path, nonzero W.
    k1, k2 = jax.random.split(key)
    weight2 = 0.01 * jax.random.normal(k2, (dim, dim), dtype=jnp.float32)
    y2 = jax.block_until_ready(full_rank_adversary(x, weight2))
    y2_ref = x @ weight2.T + x
    assert jnp.allclose(y2, y2_ref, atol=2e-3), "mismatch vs reference (dim=32)"

    # Exercise the K-reduction grid axis + padding (dim=640 -> dim_pad=768,
    # gk=3, gn=3) with a small nonzero weight.
    dim_big = 640
    xb = jax.random.normal(k1, (batch, seq, dim_big), dtype=jnp.float32)
    wb = 0.01 * jax.random.normal(k2, (dim_big, dim_big), dtype=jnp.float32)
    yb = jax.block_until_ready(full_rank_adversary(xb, wb))
    yb_ref = xb @ wb.T + xb
    assert jnp.allclose(yb, yb_ref, atol=2e-2), "mismatch vs reference (dim=640)"

    print("KERNEL_OK")
</pallas_src>

<mosaic_0001>
module attributes {stable_mosaic.version = 11 : i64} {
  func.func @_adversary_kernel(%arg0: i32, %arg1: i32, %arg2: i32, %arg3: memref<16x256xbf16, #tpu.memory_space<vmem>>, %arg4: memref<256x256xbf16, #tpu.memory_space<vmem>>, %arg5: memref<16x256xf32, #tpu.memory_space<vmem>>, %arg6: memref<16x256xf32, #tpu.memory_space<vmem>>, %arg7: memref<16x256xf32, #tpu.memory_space<vmem>>) attributes {dimension_semantics = [#tpu.dimension_semantics<parallel>, #tpu.dimension_semantics<parallel>, #tpu.dimension_semantics<arbitrary>], iteration_bounds = array<i64: 1, 1, 1>, scalar_prefetch = 0 : i64, scratch_operands = 1 : i64, tpu.core_type = #tpu.core_type<tc>, window_params = [{transform_indices = @transform_0, window_bounds = array<i64: 16, 256>}, {transform_indices = @transform_1, window_bounds = array<i64: 256, 256>}, {transform_indices = @transform_2, window_bounds = array<i64: 16, 256>}, {transform_indices = @transform_3, window_bounds = array<i64: 16, 256>}]} {
    %c0_i32 = arith.constant 0 : i32
    %0 = arith.cmpi eq, %arg2, %c0_i32 : i32
    %1 = arith.extui %0 : i1 to i32
    %c0_i32_0 = arith.constant 0 : i32
    %2 = arith.cmpi ne, %1, %c0_i32_0 : i32
    scf.if %2 {
      %cst_10 = arith.constant 0.000000e+00 : f32
      %12 = vector.broadcast %cst_10 : f32 to vector<16x256xf32>
      %c0_11 = arith.constant 0 : index
      %c0_12 = arith.constant 0 : index
      %13 = vector.load %arg7[%c0_11, %c0_12] : memref<16x256xf32, #tpu.memory_space<vmem>>, vector<16x256xf32>
      tpu.vector_store %arg7[%c0_11, %c0_12], %12 {strides = array<i32>} : memref<16x256xf32, #tpu.memory_space<vmem>>, vector<16x256xf32>,
    } else {
    }
    %c0 = arith.constant 0 : index
    %c0_1 = arith.constant 0 : index
    %3 = vector.load %arg7[%c0, %c0_1] : memref<16x256xf32, #tpu.memory_space<vmem>>, vector<16x256xf32>
    %c0_2 = arith.constant 0 : index
    %c0_3 = arith.constant 0 : index
    %4 = vector.load %arg3[%c0_2, %c0_3] : memref<16x256xbf16, #tpu.memory_space<vmem>>, vector<16x256xbf16>
    %c0_4 = arith.constant 0 : index
    %c0_5 = arith.constant 0 : index
    %5 = vector.load %arg4[%c0_4, %c0_5] : memref<256x256xbf16, #tpu.memory_space<vmem>>, vector<256x256xbf16>
    %cst = arith.constant dense<0.000000e+00> : vector<16x256xf32>
    %6 = tpu.matmul %4, %5, %cst {dimension_numbers = #tpu.dot_dimension_numbers<[1], [0], [0], [1], [0, 0, 1, 1], [], []>} : vector<16x256xbf16>, vector<256x256xbf16>, vector<16x256xf32> -> vector<16x256xf32>
    %7 = arith.addf %3, %6 : vector<16x256xf32>
    %c0_6 = arith.constant 0 : index
    %c0_7 = arith.constant 0 : index
    %8 = vector.load %arg7[%c0_6, %c0_7] : memref<16x256xf32, #tpu.memory_space<vmem>>, vector<16x256xf32>
    tpu.vector_store %arg7[%c0_6, %c0_7], %7 {strides = array<i32>} : memref<16x256xf32, #tpu.memory_space<vmem>>, vector<16x256xf32>,
    %c0_i32_8 = arith.constant 0 : i32
    %9 = arith.cmpi eq, %arg2, %c0_i32_8 : i32
    %10 = arith.extui %9 : i1 to i32
    %c0_i32_9 = arith.constant 0 : i32
    %11 = arith.cmpi ne, %10, %c0_i32_9 : i32
    scf.if %11 {
      %c0_10 = arith.constant 0 : index
      %c0_11 = arith.constant 0 : index
      %12 = vector.load %arg7[%c0_10, %c0_11] : memref<16x256xf32, #tpu.memory_space<vmem>>, vector<16x256xf32>
      %c0_12 = arith.constant 0 : index
      %c0_13 = arith.constant 0 : index
      %13 = vector.load %arg5[%c0_12, %c0_13] : memref<16x256xf32, #tpu.memory_space<vmem>>, vector<16x256xf32>
      %14 = arith.addf %12, %13 : vector<16x256xf32>
      %c0_14 = arith.constant 0 : index
      %c0_15 = arith.constant 0 : index
      %15 = vector.load %arg6[%c0_14, %c0_15] : memref<16x256xf32, #tpu.memory_space<vmem>>, vector<16x256xf32>
      tpu.vector_store %arg6[%c0_14, %c0_15], %14 {strides = array<i32>} : memref<16x256xf32, #tpu.memory_space<vmem>>, vector<16x256xf32>,
    } else {
    }
    return
  }
  func.func @transform_0(%arg0: i32, %arg1: i32, %arg2: i32) -> (i32, i32) {
    %c0_i32 = arith.constant 0 : i32
    return %arg0, %arg2 : i32, i32
  }
  func.func @transform_1(%arg0: i32, %arg1: i32, %arg2: i32) -> (i32, i32) {
    %c0_i32 = arith.constant 0 : i32
    return %arg2, %arg1 : i32, i32
  }
  func.func @transform_2(%arg0: i32, %arg1: i32, %arg2: i32) -> (i32, i32) {
    %c0_i32 = arith.constant 0 : i32
    return %arg0, %arg1 : i32, i32
  }
  func.func @transform_3(%arg0: i32, %arg1: i32, %arg2: i32) -> (i32, i32) {
    %c0_i32 = arith.constant 0 : i32
    return %arg0, %arg1 : i32, i32
  }
}

</mosaic_0001>

<llo_original>
// kernel: tpu_custom_call.1
$region0: #{tpu_custom_call.1}
  #allocation0 [shape = 'u32[]', space=smem, size = 0x4, offset = 0x4, fixed_abs, tag = 'smem constant byte address 0x4 - core index']
  #allocation1 [shape = 'u32[72,128]{1,0:T(1,128)}', space=vmem, size = 0x9000, scoped, tag = 'internal scratch']
  #allocation2 [shape = 'f32[16,256]{1,0:T(8,128)}', space=vmem, size = 0x4000, scoped, tag = 'scratch operand']
  %s0 = inlined_call_operand.hbm [shape: bf16[16,256], index: 0, kind: input, shape index: {}]
  %s1 = inlined_call_operand.hbm [shape: bf16[256,256], index: 1, kind: input, shape index: {}]
  %s2 = inlined_call_operand.hbm [shape: f32[16,256], index: 2, kind: input, shape index: {}]
  %s3 = inlined_call_operand.hbm [shape: f32[16,256], index: 3, kind: output, shape index: {}]
  %s4 = sld [smem:[#allocation0]]
  $region42: #{tpu_custom_call.1} parent=0
    _
  %s6 = ssub.s32 1, %s4
  %s7 = scalar_select 0, %s6, %s4
  $region1: #{tpu_custom_call.1} parent=0
    #allocation3 [shape = 'u8[8192]{0}', space=vmem, size = 0x2000, scoped, tag = 'input window, operand 0, single buffered']
    #allocation4 [shape = 's32[1]{0}', space=sflag, size = 0x4, scoped, tag = 'scoped memory for tpu_custom_call.1']
    #allocation5 [shape = 's32[1]{0}', space=sflag, size = 0x4, scoped, tag = 'scoped memory for tpu_custom_call.1']
    #allocation6 [shape = 'u8[131072]{0}', space=vmem, size = 0x20000, scoped, tag = 'input window, operand 1, single buffered']
    #allocation7 [shape = 's32[1]{0}', space=sflag, size = 0x4, scoped, tag = 'scoped memory for tpu_custom_call.1']
    #allocation8 [shape = 'u8[16384]{0}', space=vmem, size = 0x4000, scoped, tag = 'input window, operand 2, single buffered']
    #allocation9 [shape = 'u8[16384]{0}', space=vmem, size = 0x4000, scoped, tag = 'output window, operand 0, single buffered']
    %8 = vsyncpa [#allocation4], 0
    %9 = vsyncpa [#allocation7], 0
    %10 = vsyncpa [#allocation5], 0
    // Predicated region
    $region2: #{tpu_custom_call.1} parent=1 // pred_check
      _
    $region3: #{tpu_custom_call.1} parent=1 // pred_check_branch
      %12 = sbr.rel (0) target = $region5
    $region4: #{tpu_custom_call.1} parent=1 // pred_region
      %14 = vsyncadd [#allocation4], 0
      %s15 = sshll.u32 %s0, 4
      %s16 = int_to_ptr.hbm [resolvable:$true] %s15
      %s17 = sshll.u32 [#allocation3], 4
      %s18 = int_to_ptr.vmem [resolvable:$true] %s17
      %23 = dma.hbm_to_vmem [thread:$0]  %s16, 256, %s18, [#allocation4], 128, 128, 8
    $region5: #{tpu_custom_call.1} parent=1 // pred_fallthru
      _
    // Predicated region
    $region6: #{tpu_custom_call.1} parent=1 // pred_check
      _
    $region7: #{tpu_custom_call.1} parent=1 // pred_check_branch
      %25 = sbr.rel (0) target = $region9
    $region8: #{tpu_custom_call.1} parent=1 // pred_region
      %27 = vsyncadd [#allocation7], 0
      %s28 = sshll.u32 %s1, 4
      %s29 = int_to_ptr.hbm [resolvable:$true] %s28
      %s30 = sshll.u32 [#allocation6], 4
      %s31 = int_to_ptr.vmem [resolvable:$true] %s30
      %36 = dma.hbm_to_vmem [thread:$0]  %s29, 4096, %s31, [#allocation7], 128, 128, 8
    $region9: #{tpu_custom_call.1} parent=1 // pred_fallthru
      _
    // Predicated region
    $region10: #{tpu_custom_call.1} parent=1 // pred_check
      _
    $region11: #{tpu_custom_call.1} parent=1 // pred_check_branch
      %38 = sbr.rel (0) target = $region13
    $region12: #{tpu_custom_call.1} parent=1 // pred_region
      %40 = vsyncadd [#allocation7], 0
      %s41 = sshll.u32 %s2, 4
      %s42 = int_to_ptr.hbm [resolvable:$true] %s41
      %s43 = sshll.u32 [#allocation8], 4
      %s44 = int_to_ptr.vmem [resolvable:$true] %s43
      %49 = dma.hbm_to_vmem [thread:$0]  %s42, 512, %s44, [#allocation7], 256, 256, 16
    $region13: #{tpu_custom_call.1} parent=1 // pred_fallthru
      _
    // Predicated region
    $region14: #{tpu_custom_call.1} parent=1 // pred_check
      _
    $region15: #{tpu_custom_call.1} parent=1 // pred_check_branch
      %51 = sbr.rel (0) target = $region17
    $region16: #{tpu_custom_call.1} parent=1 // pred_region
      %53 = dma.done [#allocation4], 256
    $region17: #{tpu_custom_call.1} parent=1 // pred_fallthru
      _
    // Predicated region
    $region18: #{tpu_custom_call.1} parent=1 // pred_check
      _
    $region19: #{tpu_custom_call.1} parent=1 // pred_check_branch
      %55 = sbr.rel (0) target = $region21
    $region20: #{tpu_custom_call.1} parent=1 // pred_region
      %57 = dma.done [#allocation7], 4096
    $region21: #{tpu_custom_call.1} parent=1 // pred_fallthru
      _
    // Predicated region
    $region22: #{tpu_custom_call.1} parent=1 // pred_check
      _
    $region23: #{tpu_custom_call.1} parent=1 // pred_check_branch
      %59 = sbr.rel (0) target = $region25
    $region24: #{tpu_custom_call.1} parent=1 // pred_region
      %61 = dma.done [#allocation7], 512
    $region25: #{tpu_custom_call.1} parent=1 // pred_fallthru
      _
    %p62 = scmp.eq.s32.totalorder 0, 0
    // Predicated region
    $region26: #{tpu_custom_call.1} parent=1 // pred_check
      %p63 = pneg %p62
    $region27: #{tpu_custom_call.1} parent=1 // pred_check_branch
      %65 = sbr.rel (%p63) target = $region29
    $region28: #{tpu_custom_call.1} parent=1 // pred_region
      %66 = vst [vmem:[#allocation2] sm:$0xff] 0.0
      %67 = vst [vmem:[#allocation2 + $0x8] sm:$0xff] 0.0
      %68 = vst [vmem:[#allocation2 + $0x10] sm:$0xff] 0.0
      %69 = vst [vmem:[#allocation2 + $0x18] sm:$0xff] 0.0
    $region29: #{tpu_custom_call.1} parent=1 // pred_fallthru
      _
    %v70 = vld [vmem:[#allocation2] sm:$0xff]
    %v71 = vld [vmem:[#allocation2 + $0x8] sm:$0xff]
    %v72 = vld [vmem:[#allocation2 + $0x10] sm:$0xff]
    %v73 = vld [vmem:[#allocation2 + $0x18] sm:$0xff]
    %v74 = vld [vmem:[#allocation3] sm:$0xff]
    %v75 = vld [vmem:[#allocation3 + $0x8] sm:$0xff]
    %v76 = vld [vmem:[#allocation6] sm:$0xff]
    %v77 = vld [vmem:[#allocation6 + $0x8] sm:$0xff]
    %v78 = vld [vmem:[#allocation6 + $0x10] sm:$0xff]
    %v79 = vld [vmem:[#allocation6 + $0x18] sm:$0xff]
    %v80 = vld [vmem:[#allocation6 + $0x20] sm:$0xff]
    %v81 = vld [vmem:[#allocation6 + $0x28] sm:$0xff]
    %v82 = vld [vmem:[#allocation6 + $0x30] sm:$0xff]
    %v83 = vld [vmem:[#allocation6 + $0x38] sm:$0xff]
    %v84 = vld [vmem:[#allocation6 + $0x40] sm:$0xff]
    %v85 = vld [vmem:[#allocation6 + $0x48] sm:$0xff]
    %v86 = vld [vmem:[#allocation6 + $0x50] sm:$0xff]
    %v87 = vld [vmem:[#allocation6 + $0x58] sm:$0xff]
    %v88 = vld [vmem:[#allocation6 + $0x60] sm:$0xff]
    %v89 = vld [vmem:[#allocation6 + $0x68] sm:$0xff]
    %v90 = vld [vmem:[#allocation6 + $0x70] sm:$0xff]
    %v91 = vld [vmem:[#allocation6 + $0x78] sm:$0xff]
    %v92 = vld [vmem:[#allocation6 + $0x80] sm:$0xff]
    %v93 = vld [vmem:[#allocation6 + $0x88] sm:$0xff]
    %v94 = vld [vmem:[#allocation6 + $0x90] sm:$0xff]
    %v95 = vld [vmem:[#allocation6 + $0x98] sm:$0xff]
    %v96 = vld [vmem:[#allocation6 + $0xa0] sm:$0xff]
    %v97 = vld [vmem:[#allocation6 + $0xa8] sm:$0xff]
    %v98 = vld [vmem:[#allocation6 + $0xb0] sm:$0xff]
    %v99 = vld [vmem:[#allocation6 + $0xb8] sm:$0xff]
    %v100 = vld [vmem:[#allocation6 + $0xc0] sm:$0xff]
    %v101 = vld [vmem:[#allocation6 + $0xc8] sm:$0xff]
    %v102 = vld [vmem:[#allocation6 + $0xd0] sm:$0xff]
    %v103 = vld [vmem:[#allocation6 + $0xd8] sm:$0xff]
    %v104 = vld [vmem:[#allocation6 + $0xe0] sm:$0xff]
    %v105 = vld [vmem:[#allocation6 + $0xe8] sm:$0xff]
    %v106 = vld [vmem:[#allocation6 + $0xf0] sm:$0xff]
    %v107 = vld [vmem:[#allocation6 + $0xf8] sm:$0xff]
    %v110 = vunpack.c.l.b16 %v74
    %v111 = vunpack.c.h.b16 %v74
    %v112 = vunpack.c.l.b16 %v75
    %v113 = vunpack.c.h.b16 %v75
    %v114 = vpack.c.b16 %v112, %v110
    %v115 = vpack.c.b16 %v113, %v111
    %v150 = vunpack.c.l.b16 %v76
    %v151 = vunpack.c.h.b16 %v76
    %v152 = vunpack.c.l.b16 %v77
    %v153 = vunpack.c.h.b16 %v77
    %v154 = vunpack.c.l.b16 %v78
    %v155 = vunpack.c.h.b16 %v78
    %v156 = vunpack.c.l.b16 %v79
    %v157 = vunpack.c.h.b16 %v79
    %v158 = vunpack.c.l.b16 %v80
    %v159 = vunpack.c.h.b16 %v80
    %v160 = vunpack.c.l.b16 %v81
    %v161 = vunpack.c.h.b16 %v81
    %v162 = vunpack.c.l.b16 %v82
    %v163 = vunpack.c.h.b16 %v82
    %v164 = vunpack.c.l.b16 %v83
    %v165 = vunpack.c.h.b16 %v83
    %v166 = vunpack.c.l.b16 %v84
    %v167 = vunpack.c.h.b16 %v84
    %v168 = vunpack.c.l.b16 %v85
    %v169 = vunpack.c.h.b16 %v85
    %v170 = vunpack.c.l.b16 %v86
    %v171 = vunpack.c.h.b16 %v86
    %v172 = vunpack.c.l.b16 %v87
    %v173 = vunpack.c.h.b16 %v87
    %v174 = vunpack.c.l.b16 %v88
    %v175 = vunpack.c.h.b16 %v88
    %v176 = vunpack.c.l.b16 %v89
    %v177 = vunpack.c.h.b16 %v89
    %v178 = vunpack.c.l.b16 %v90
    %v179 = vunpack.c.h.b16 %v90
    %v180 = vunpack.c.l.b16 %v91
    %v181 = vunpack.c.h.b16 %v91
    %v182 = vunpack.c.l.b16 %v92
    %v183 = vunpack.c.h.b16 %v92
    %v184 = vunpack.c.l.b16 %v93
    %v185 = vunpack.c.h.b16 %v93
    %v186 = vunpack.c.l.b16 %v94
    %v187 = vunpack.c.h.b16 %v94
    %v188 = vunpack.c.l.b16 %v95
    %v189 = vunpack.c.h.b16 %v95
    %v190 = vunpack.c.l.b16 %v96
    %v191 = vunpack.c.h.b16 %v96
    %v192 = vunpack.c.l.b16 %v97
    %v193 = vunpack.c.h.b16 %v97
    %v194 = vunpack.c.l.b16 %v98
    %v195 = vunpack.c.h.b16 %v98
    %v196 = vunpack.c.l.b16 %v99
    %v197 = vunpack.c.h.b16 %v99
    %v198 = vunpack.c.l.b16 %v100
    %v199 = vunpack.c.h.b16 %v100
    %v200 = vunpack.c.l.b16 %v101
    %v201 = vunpack.c.h.b16 %v101
    %v202 = vunpack.c.l.b16 %v102
    %v203 = vunpack.c.h.b16 %v102
    %v204 = vunpack.c.l.b16 %v103
    %v205 = vunpack.c.h.b16 %v103
    %v206 = vunpack.c.l.b16 %v104
    %v207 = vunpack.c.h.b16 %v104
    %v208 = vunpack.c.l.b16 %v105
    %v209 = vunpack.c.h.b16 %v105
    %v210 = vunpack.c.l.b16 %v106
    %v211 = vunpack.c.h.b16 %v106
    %v212 = vunpack.c.l.b16 %v107
    %v213 = vunpack.c.h.b16 %v107
    %v214 = vpack.c.b16 %v152, %v150
    %v215 = vpack.c.b16 %v153, %v151
    %v216 = vpack.c.b16 %v156, %v154
    %v217 = vpack.c.b16 %v157, %v155
    %v218 = vpack.c.b16 %v160, %v158
    %v219 = vpack.c.b16 %v161, %v159
    %v220 = vpack.c.b16 %v164, %v162
    %v221 = vpack.c.b16 %v165, %v163
    %v222 = vpack.c.b16 %v168, %v166
    %v223 = vpack.c.b16 %v169, %v167
    %v224 = vpack.c.b16 %v172, %v170
    %v225 = vpack.c.b16 %v173, %v171
    %v226 = vpack.c.b16 %v176, %v174
    %v227 = vpack.c.b16 %v177, %v175
    %v228 = vpack.c.b16 %v180, %v178
    %v229 = vpack.c.b16 %v181, %v179
    %v230 = vpack.c.b16 %v184, %v182
    %v231 = vpack.c.b16 %v185, %v183
    %v232 = vpack.c.b16 %v188, %v186
    %v233 = vpack.c.b16 %v189, %v187
    %v234 = vpack.c.b16 %v192, %v190
    %v235 = vpack.c.b16 %v193, %v191
    %v236 = vpack.c.b16 %v196, %v194
    %v237 = vpack.c.b16 %v197, %v195
    %v238 = vpack.c.b16 %v200, %v198
    %v239 = vpack.c.b16 %v201, %v199
    %v240 = vpack.c.b16 %v204, %v202
    %v241 = vpack.c.b16 %v205, %v203
    %v242 = vpack.c.b16 %v208, %v206
    %v243 = vpack.c.b16 %v209, %v207
    %v244 = vpack.c.b16 %v212, %v210
    %v245 = vpack.c.b16 %v213, %v211
    %278 = vmatpush.bf16.msra.mxu0 %v228
    %279 = vmatpush.bf16.msra.mxu0 %v226
    %280 = vmatpush.bf16.msra.mxu0 %v224
    %281 = vmatpush.bf16.msra.mxu0 %v222
    %282 = vmatpush.bf16.msra.mxu0 %v220
    %283 = vmatpush.bf16.msra.mxu0 %v218
    %284 = vmatpush.bf16.msra.mxu0 %v216
    %285 = vmatpush.bf16.msra.mxu0 %v214
    %286 = vmatmul.bf16.gmra.mxu0 %v114
    %v287 = vpop.f32.mrf.mxu0
    %v288 = vadd.f32 0.0, %v287
    %v289 = vpop.f32.mrf.mxu0
    %v290 = vadd.f32 0.0, %v289
    %291 = vdwg.mxu0
    %292 = vmatpush.bf16.msra.mxu0 %v244
    %293 = vmatpush.bf16.msra.mxu0 %v242
    %294 = vmatpush.bf16.msra.mxu0 %v240
    %295 = vmatpush.bf16.msra.mxu0 %v238
    %296 = vmatpush.bf16.msra.mxu0 %v236
    %297 = vmatpush.bf16.msra.mxu0 %v234
    %298 = vmatpush.bf16.msra.mxu0 %v232
    %299 = vmatpush.bf16.msra.mxu0 %v230
    %300 = vmatmul.bf16.gmra.mxu0 %v115
    %v301 = vpop.f32.mrf.mxu0
    %v302 = vadd.f32 %v288, %v301
    %v303 = vpop.f32.mrf.mxu0
    %v304 = vadd.f32 %v290, %v303
    %305 = vdwg.mxu0
    %306 = vmatpush.bf16.msra.mxu0 %v229
    %307 = vmatpush.bf16.msra.mxu0 %v227
    %308 = vmatpush.bf16.msra.mxu0 %v225
    %309 = vmatpush.bf16.msra.mxu0 %v223
    %310 = vmatpush.bf16.msra.mxu0 %v221
    %311 = vmatpush.bf16.msra.mxu0 %v219
    %312 = vmatpush.bf16.msra.mxu0 %v217
    %313 = vmatpush.bf16.msra.mxu0 %v215
    %314 = vmatmul.bf16.gmra.mxu0 %v114
    %v315 = vpop.f32.mrf.mxu0
    %v316 = vadd.f32 0.0, %v315
    %v317 = vpop.f32.mrf.mxu0
    %v318 = vadd.f32 0.0, %v317
    %319 = vdwg.mxu0
    %320 = vmatpush.bf16.msra.mxu0 %v245
    %321 = vmatpush.bf16.msra.mxu0 %v243
    %322 = vmatpush.bf16.msra.mxu0 %v241
    %323 = vmatpush.bf16.msra.mxu0 %v239
    %324 = vmatpush.bf16.msra.mxu0 %v237
    %325 = vmatpush.bf16.msra.mxu0 %v235
    %326 = vmatpush.bf16.msra.mxu0 %v233
    %327 = vmatpush.bf16.msra.mxu0 %v231
    %328 = vmatmul.bf16.gmra.mxu0 %v115
    %v329 = vpop.f32.mrf.mxu0
    %v330 = vadd.f32 %v316, %v329
    %v331 = vpop.f32.mrf.mxu0
    %v332 = vadd.f32 %v318, %v331
    %333 = vdwg.mxu0
    %v334 = vadd.f32 %v70, %v302
    %v335 = vadd.f32 %v71, %v330
    %v336 = vadd.f32 %v72, %v304
    %v337 = vadd.f32 %v73, %v332
    %338 = vst [vmem:[#allocation2] sm:$0xff] %v334
    %339 = vst [vmem:[#allocation2 + $0x8] sm:$0xff] %v335
    %340 = vst [vmem:[#allocation2 + $0x10] sm:$0xff] %v336
    %341 = vst [vmem:[#allocation2 + $0x18] sm:$0xff] %v337
    // Predicated region
    $region30: #{tpu_custom_call.1} parent=1 // pred_check
      %p342 = pneg %p62
    $region31: #{tpu_custom_call.1} parent=1 // pred_check_branch
      %344 = sbr.rel (%p342) target = $region33
    $region32: #{tpu_custom_call.1} parent=1 // pred_region
      %v345 = vld [vmem:[#allocation2] sm:$0xff]
      %v346 = vld [vmem:[#allocation2 + $0x8] sm:$0xff]
      %v347 = vld [vmem:[#allocation2 + $0x10] sm:$0xff]
      %v348 = vld [vmem:[#allocation2 + $0x18] sm:$0xff]
      %v349 = vld [vmem:[#allocation8] sm:$0xff]
      %v350 = vld [vmem:[#allocation8 + $0x8] sm:$0xff]
      %v351 = vld [vmem:[#allocation8 + $0x10] sm:$0xff]
      %v352 = vld [vmem:[#allocation8 + $0x18] sm:$0xff]
      %v353 = vadd.f32 %v345, %v349
      %v354 = vadd.f32 %v346, %v350
      %v355 = vadd.f32 %v347, %v351
      %v356 = vadd.f32 %v348, %v352
      %357 = vst [vmem:[#allocation9] sm:$0xff] %v353
      %358 = vst [vmem:[#allocation9 + $0x8] sm:$0xff] %v354
      %359 = vst [vmem:[#allocation9 + $0x10] sm:$0xff] %v355
      %360 = vst [vmem:[#allocation9 + $0x18] sm:$0xff] %v356
    $region33: #{tpu_custom_call.1} parent=1 // pred_fallthru
      _
    // Predicated region
    $region34: #{tpu_custom_call.1} parent=1 // pred_check
      _
    $region35: #{tpu_custom_call.1} parent=1 // pred_check_branch
      %362 = sbr.rel (0) target = $region37
    $region36: #{tpu_custom_call.1} parent=1 // pred_region
      %364 = vsyncadd [#allocation5], 0
      %s365 = sshll.u32 [#allocation9], 4
      %s366 = int_to_ptr.vmem [resolvable:$true] %s365
      %s367 = sshll.u32 %s3, 4
      %s368 = int_to_ptr.hbm [resolvable:$true] %s367
      %373 = dma.vmem_to_hbm [thread:$0]  %s366, 512, %s368, [#allocation5], 256, 256, 16
    $region37: #{tpu_custom_call.1} parent=1 // pred_fallthru
      _
    // Predicated region
    $region38: #{tpu_custom_call.1} parent=1 // pred_check
      _
    $region39: #{tpu_custom_call.1} parent=1 // pred_check_branch
      %375 = sbr.rel (0) target = $region41
    $region40: #{tpu_custom_call.1} parent=1 // pred_region
      %377 = dma.done [#allocation5], 512
    $region41: #{tpu_custom_call.1} parent=1 // pred_fallthru
      _
    %378 = vsyncpa [#allocation4], 1
    %379 = vsyncpa [#allocation7], 1
    %380 = vsyncpa [#allocation5], 1

</llo_original>
